<compile_context>
chip_gen: v7x
topology: tpu7x:2x2x1
jax: 0.10.0
libtpu: 0.0.40
codegen_flags: <defaults>
</compile_context>

<pallas_src>
import functools

import jax
import jax.numpy as jnp
from jax.experimental import pallas as pl
from jax.experimental.pallas import tpu as pltpu

FEAT_IN = 744
FEAT_PAD = 768   # 6 * 128, lane-aligned
HIDDEN = 64


def _round_up(n, m):
    return ((n + m - 1) // m) * m


def transfer_head_kernel(x_ref, w1_ref, b1_ref, w2_ref, b2_ref, out_ref):
    # fc1: (TILE_B, 768) @ (768, 64) + (1, 64)  -> MXU, f32 accumulation
    h = jnp.dot(x_ref[...], w1_ref[...], preferred_element_type=jnp.float32)
    h = h + b1_ref[...]
    # ReLU
    h = jnp.maximum(h, 0.0)
    # fc2 with out_features=1: VPU multiply + 64-lane reduce (keep MXU free)
    o = jnp.sum(h * w2_ref[...], axis=-1, keepdims=True) + b2_ref[0, 0]
    # Numerically stable sigmoid: exp() only ever sees a non-positive argument.
    z = jnp.exp(-jnp.abs(o))
    sig = jnp.where(o >= 0.0, 1.0 / (1.0 + z), z / (1.0 + z))
    out_ref[...] = sig.astype(out_ref.dtype)


def transfer_model_forward(x, w1, b1, w2, b2, *, tile_b=1024):
    """x: (B, 744) f32 (base_model output).  Returns (B, 1) f32."""
    # TODO(synk): base_model is an opaque submodule in the reference; applied as identity here.
    B = x.shape[0]
    x = x.reshape(B, -1).astype(jnp.float32)          # x.view(x.size(0), -1)
    assert x.shape[1] == FEAT_IN, "flattened feature dim must be 744 (fc1.in_features)"

    # Pad feature dim 744 -> 768: zero columns in x, zero rows in w1^T (exact same result).
    x = jnp.pad(x, ((0, 0), (0, FEAT_PAD - FEAT_IN)))
    w1_t = jnp.pad(w1.T.astype(jnp.float32), ((0, FEAT_PAD - FEAT_IN), (0, 0)))  # (768, 64)
    b1_2d = b1.reshape(1, HIDDEN).astype(jnp.float32)                            # (1, 64)
    w2_row = w2.reshape(1, HIDDEN).astype(jnp.float32)                           # (1, 64)
    b2_2d = b2.reshape(1, 1).astype(jnp.float32)                                 # (1, 1) -> SMEM

    # Batch tiling: bound VMEM to ~2 * TILE_B * 768 * 4B regardless of B.
    tile_b = max(8, min(tile_b, _round_up(B, 8)))
    b_pad = _round_up(B, tile_b)
    if b_pad != B:
        x = jnp.pad(x, ((0, b_pad - B), (0, 0)))       # zero rows -> harmless, sliced off below
    grid = (b_pad // tile_b,)

    out = pl.pallas_call(
        transfer_head_kernel,
        out_shape=jax.ShapeDtypeStruct((b_pad, 1), jnp.float32),
        grid=grid,
        in_specs=[
            pl.BlockSpec((tile_b, FEAT_PAD), lambda i: (i, 0)),      # x: streamed per tile
            pl.BlockSpec((FEAT_PAD, HIDDEN), lambda i: (0, 0)),      # w1: resident
            pl.BlockSpec((1, HIDDEN), lambda i: (0, 0)),             # b1: resident
            pl.BlockSpec((1, HIDDEN), lambda i: (0, 0)),             # w2 row: resident
            pl.BlockSpec(memory_space=pltpu.MemorySpace.SMEM),       # b2: scalar in SMEM
        ],
        out_specs=pl.BlockSpec((tile_b, 1), lambda i: (i, 0)),
        compiler_params=pltpu.CompilerParams(
            dimension_semantics=("parallel",),        # shard batch tiles across TCs (v7x)
            vmem_limit_bytes=32 * 1024 * 1024,        # explicit: portable across v5e/v6e/v7x
        ),
    )(x, w1_t, b1_2d, w2_row, b2_2d)
    return out[:B]


def init_params(key):
    """Deterministic PyTorch-style Linear init: U(-1/sqrt(fan_in), 1/sqrt(fan_in))."""
    k1, k2, k3, k4 = jax.random.split(key, 4)
    bound1 = 1.0 / jnp.sqrt(744.0)
    bound2 = 1.0 / jnp.sqrt(64.0)
    w1 = jax.random.uniform(k1, (64, 744), jnp.float32, -bound1, bound1)   # fc1.weight
    b1 = jax.random.uniform(k2, (64,), jnp.float32, -bound1, bound1)       # fc1.bias
    w2 = jax.random.uniform(k3, (1, 64), jnp.float32, -bound2, bound2)     # fc2.weight
    b2 = jax.random.uniform(k4, (1,), jnp.float32, -bound2, bound2)        # fc2.bias
    return w1, b1, w2, b2


def _ref_forward(x, w1, b1, w2, b2):
    return jax.nn.sigmoid(jnp.maximum(x @ w1.T + b1, 0.0) @ w2.T + b2)


if __name__ == "__main__":
    key = jax.random.PRNGKey(0)
    kx, kx2, kp = jax.random.split(key, 3)
    w1, b1, w2, b2 = init_params(kp)

    # Small test, single tile.
    B = 2
    x = jax.random.normal(kx, (B, 744), jnp.float32)  # base_model output, pre-flatten
    out = jax.block_until_ready(transfer_model_forward(x, w1, b1, w2, b2))
    ref = _ref_forward(x, w1, b1, w2, b2)
    assert out.shape == (B, 1)
    assert jnp.allclose(out, ref, atol=1e-5, rtol=1e-5)

    # Exercise the multi-tile grid + partial last tile path (B=20, TILE_B=8 -> grid=(3,)).
    B2 = 20
    x2 = jax.random.normal(kx2, (B2, 744), jnp.float32)
    out2 = jax.block_until_ready(transfer_model_forward(x2, w1, b1, w2, b2, tile_b=8))
    ref2 = _ref_forward(x2, w1, b1, w2, b2)
    assert out2.shape == (B2, 1)
    assert jnp.allclose(out2, ref2, atol=1e-5, rtol=1e-5)

    print("KERNEL_OK")
</pallas_src>

<mosaic_0001>
module attributes {stable_mosaic.version = 11 : i64} {
  func.func @transfer_head_kernel(%arg0: i32, %arg1: memref<8x768xf32, #tpu.memory_space<vmem>>, %arg2: memref<768x64xf32, #tpu.memory_space<vmem>>, %arg3: memref<1x64xf32, #tpu.memory_space<vmem>>, %arg4: memref<1x64xf32, #tpu.memory_space<vmem>>, %arg5: memref<1x1xf32, #tpu.memory_space<smem>>, %arg6: memref<8x1xf32, #tpu.memory_space<vmem>>) attributes {dimension_semantics = [#tpu.dimension_semantics<parallel>], iteration_bounds = array<i64: 1>, scalar_prefetch = 0 : i64, scratch_operands = 0 : i64, tpu.core_type = #tpu.core_type<tc>, window_params = [{transform_indices = @transform_0, window_bounds = array<i64: 8, 768>}, {pipeline_mode = #tpu.pipeline_mode<synchronous>, transform_indices = @transform_1, window_bounds = array<i64: 768, 64>}, {pipeline_mode = #tpu.pipeline_mode<synchronous>, transform_indices = @transform_2, window_bounds = array<i64: 1, 64>}, {pipeline_mode = #tpu.pipeline_mode<synchronous>, transform_indices = @transform_3, window_bounds = array<i64: 1, 64>}, {transform_indices = @transform_4, window_bounds = array<i64: 1, 1>}, {transform_indices = @transform_5, window_bounds = array<i64: 8, 1>}]} {
    %c0 = arith.constant 0 : index
    %c0_0 = arith.constant 0 : index
    %0 = vector.load %arg1[%c0, %c0_0] : memref<8x768xf32, #tpu.memory_space<vmem>>, vector<8x768xf32>
    %c0_1 = arith.constant 0 : index
    %c0_2 = arith.constant 0 : index
    %1 = vector.load %arg2[%c0_1, %c0_2] : memref<768x64xf32, #tpu.memory_space<vmem>>, vector<768x64xf32>
    %cst = arith.constant dense<0.000000e+00> : vector<8x64xf32>
    %2 = tpu.matmul %0, %1, %cst {dimension_numbers = #tpu.dot_dimension_numbers<[1], [0], [0], [1], [0, 0, 1, 1], [], []>} : vector<8x768xf32>, vector<768x64xf32>, vector<8x64xf32> -> vector<8x64xf32>
    %c0_3 = arith.constant 0 : index
    %c0_4 = arith.constant 0 : index
    %3 = vector.load %arg3[%c0_3, %c0_4] : memref<1x64xf32, #tpu.memory_space<vmem>>, vector<1x64xf32>
    %4 = vector.broadcast %3 : vector<1x64xf32> to vector<8x64xf32>
    %5 = arith.addf %2, %4 : vector<8x64xf32>
    %cst_5 = arith.constant 0.000000e+00 : f32
    %6 = vector.broadcast %cst_5 : f32 to vector<8x64xf32>
    %7 = arith.maximumf %5, %6 : vector<8x64xf32>
    %c0_6 = arith.constant 0 : index
    %c0_7 = arith.constant 0 : index
    %8 = vector.load %arg4[%c0_6, %c0_7] : memref<1x64xf32, #tpu.memory_space<vmem>>, vector<1x64xf32>
    %9 = vector.broadcast %8 : vector<1x64xf32> to vector<8x64xf32>
    %10 = arith.mulf %7, %9 : vector<8x64xf32>
    %cst_8 = arith.constant dense<0.000000e+00> : vector<8xf32>
    %11 = vector.multi_reduction <add>, %10, %cst_8 [1] : vector<8x64xf32> to vector<8xf32>
    %12 = vector.shape_cast %11 : vector<8xf32> to vector<8x1xf32>
    %c0_9 = arith.constant 0 : index
    %c0_10 = arith.constant 0 : index
    %13 = memref.load %arg5[%c0_9, %c0_10] : memref<1x1xf32, #tpu.memory_space<smem>>
    %14 = vector.broadcast %13 : f32 to vector<8x1xf32>
    %15 = arith.addf %12, %14 : vector<8x1xf32>
    %16 = math.absf %15 : vector<8x1xf32>
    %cst_11 = arith.constant 0.000000e+00 : f32
    %17 = vector.broadcast %cst_11 : f32 to vector<8x1xf32>
    %18 = arith.subf %17, %16 : vector<8x1xf32>
    %19 = math.exp %18 : vector<8x1xf32>
    %cst_12 = arith.constant 0.000000e+00 : f32
    %20 = vector.broadcast %cst_12 : f32 to vector<8x1xf32>
    %21 = arith.cmpf oge, %15, %20 : vector<8x1xf32>
    %cst_13 = arith.constant 1.000000e+00 : f32
    %22 = vector.broadcast %cst_13 : f32 to vector<8x1xf32>
    %23 = arith.addf %22, %19 : vector<8x1xf32>
    %cst_14 = arith.constant 1.000000e+00 : f32
    %24 = vector.broadcast %cst_14 : f32 to vector<8x1xf32>
    %25 = arith.divf %24, %23 : vector<8x1xf32>
    %cst_15 = arith.constant 1.000000e+00 : f32
    %26 = vector.broadcast %cst_15 : f32 to vector<8x1xf32>
    %27 = arith.addf %26, %19 : vector<8x1xf32>
    %28 = arith.divf %19, %27 : vector<8x1xf32>
    %29 = arith.select %21, %25, %28 : vector<8x1xi1>, vector<8x1xf32>
    %c0_16 = arith.constant 0 : index
    %c0_17 = arith.constant 0 : index
    %30 = vector.load %arg6[%c0_16, %c0_17] : memref<8x1xf32, #tpu.memory_space<vmem>>, vector<8x1xf32>
    tpu.vector_store %arg6[%c0_16, %c0_17], %29 {strides = array<i32>} : memref<8x1xf32, #tpu.memory_space<vmem>>, vector<8x1xf32>,
    return
  }
  func.func @transform_0(%arg0: i32) -> (i32, i32) {
    %c0_i32 = arith.constant 0 : i32
    %c0_i32_0 = arith.constant 0 : i32
    return %arg0, %c0_i32 : i32, i32
  }
  func.func @transform_1(%arg0: i32) -> (i32, i32) {
    %c0_i32 = arith.constant 0 : i32
    %c0_i32_0 = arith.constant 0 : i32
    %c0_i32_1 = arith.constant 0 : i32
    return %c0_i32, %c0_i32_0 : i32, i32
  }
  func.func @transform_2(%arg0: i32) -> (i32, i32) {
    %c0_i32 = arith.constant 0 : i32
    %c0_i32_0 = arith.constant 0 : i32
    %c0_i32_1 = arith.constant 0 : i32
    return %c0_i32, %c0_i32_0 : i32, i32
  }
  func.func @transform_3(%arg0: i32) -> (i32, i32) {
    %c0_i32 = arith.constant 0 : i32
    %c0_i32_0 = arith.constant 0 : i32
    %c0_i32_1 = arith.constant 0 : i32
    return %c0_i32, %c0_i32_0 : i32, i32
  }
  func.func @transform_4(%arg0: i32) -> (i32, i32) {
    %c0_i32 = arith.constant 0 : i32
    %c0_i32_0 = arith.constant 0 : i32
    %c0_i32_1 = arith.constant 0 : i32
    return %c0_i32, %c0_i32_0 : i32, i32
  }
  func.func @transform_5(%arg0: i32) -> (i32, i32) {
    %c0_i32 = arith.constant 0 : i32
    %c0_i32_0 = arith.constant 0 : i32
    return %arg0, %c0_i32 : i32, i32
  }
}

</mosaic_0001>

<llo_original>
// kernel: tpu_custom_call.1
$region0: #{tpu_custom_call.1}
  #allocation0 [shape = 'u32[]', space=smem, size = 0x4, offset = 0x4, fixed_abs, tag = 'smem constant byte address 0x4 - core index']
  #allocation1 [shape = 'u32[144,128]{1,0:T(1,128)}', space=vmem, size = 0x12000, scoped, tag = 'internal scratch']
  #allocation2 [shape = 'f32[1,1]{1,0:T(1,128)S(6)}', space=smem, size = 0x200, scoped, tag = 'scoped memory for tpu_custom_call.1']
  %s0 = inlined_call_operand.vmem [shape: f32[8,768], index: 0, kind: input, shape index: {}]
  %s1 = inlined_call_operand.vmem [shape: f32[768,64], index: 1, kind: input, shape index: {}]
  %s2 = inlined_call_operand.vmem [shape: f32[1,64], index: 2, kind: input, shape index: {}]
  %s3 = inlined_call_operand.vmem [shape: f32[1,64], index: 3, kind: input, shape index: {}]
  %s4 = inlined_call_operand.<no memory space> [shape: f32[1,1], index: 4, kind: input, shape index: {}]
  %s5 = inlined_call_operand.vmem [shape: f32[8,1], index: 5, kind: output, shape index: {}]
  %s6 = sld [smem:[#allocation0]]
  $region30: #{tpu_custom_call.1} parent=0
    _
  %s8 = ssub.s32 1, %s6
  %s9 = scalar_select 0, %s8, %s6
  %10 = sst [smem:[#allocation2]] %s4
  // Predicated region
  $region2: #{tpu_custom_call.1} parent=0 // pred_check
    _
  $region3: #{tpu_custom_call.1} parent=0 // pred_check_branch
    %12 = sbr.rel (0) target = $region5
  $region4: #{tpu_custom_call.1} parent=0 // pred_region
    _
  $region5: #{tpu_custom_call.1} parent=0 // pred_fallthru
    _
  // Predicated region
  $region6: #{tpu_custom_call.1} parent=0 // pred_check
    _
  $region7: #{tpu_custom_call.1} parent=0 // pred_check_branch
    %14 = sbr.rel (0) target = $region9
  $region8: #{tpu_custom_call.1} parent=0 // pred_region
    _
  $region9: #{tpu_custom_call.1} parent=0 // pred_fallthru
    _
  // Predicated region
  $region10: #{tpu_custom_call.1} parent=0 // pred_check
    _
  $region11: #{tpu_custom_call.1} parent=0 // pred_check_branch
    %16 = sbr.rel (0) target = $region13
  $region12: #{tpu_custom_call.1} parent=0 // pred_region
    _
  $region13: #{tpu_custom_call.1} parent=0 // pred_fallthru
    _
  // Predicated region
  $region14: #{tpu_custom_call.1} parent=0 // pred_check
    _
  $region15: #{tpu_custom_call.1} parent=0 // pred_check_branch
    %18 = sbr.rel (0) target = $region17
  $region16: #{tpu_custom_call.1} parent=0 // pred_region
    _
  $region17: #{tpu_custom_call.1} parent=0 // pred_fallthru
    _
  // Predicated region
  $region18: #{tpu_custom_call.1} parent=0 // pred_check
    _
  $region19: #{tpu_custom_call.1} parent=0 // pred_check_branch
    %20 = sbr.rel (0) target = $region21
  $region20: #{tpu_custom_call.1} parent=0 // pred_region
    _
  $region21: #{tpu_custom_call.1} parent=0 // pred_fallthru
    _
  %v21 = vld [vmem:[%s0] sm:$0xff]
  %v22 = vld [vmem:[%s0 + $0x8] sm:$0xff]
  %v23 = vld [vmem:[%s0 + $0x10] sm:$0xff]
  %v24 = vld [vmem:[%s0 + $0x18] sm:$0xff]
  %v25 = vld [vmem:[%s0 + $0x20] sm:$0xff]
  %v26 = vld [vmem:[%s0 + $0x28] sm:$0xff]
  %v27 = vld [vmem:[%s1] sm:$0xff]
  %v28 = vld [vmem:[%s1 + $0x8] sm:$0xff]
  %v29 = vld [vmem:[%s1 + $0x10] sm:$0xff]
  %v30 = vld [vmem:[%s1 + $0x18] sm:$0xff]
  %v31 = vld [vmem:[%s1 + $0x20] sm:$0xff]
  %v32 = vld [vmem:[%s1 + $0x28] sm:$0xff]
  %v33 = vld [vmem:[%s1 + $0x30] sm:$0xff]
  %v34 = vld [vmem:[%s1 + $0x38] sm:$0xff]
  %v35 = vld [vmem:[%s1 + $0x40] sm:$0xff]
  %v36 = vld [vmem:[%s1 + $0x48] sm:$0xff]
  %v37 = vld [vmem:[%s1 + $0x50] sm:$0xff]
  %v38 = vld [vmem:[%s1 + $0x58] sm:$0xff]
  %v39 = vld [vmem:[%s1 + $0x60] sm:$0xff]
  %v40 = vld [vmem:[%s1 + $0x68] sm:$0xff]
  %v41 = vld [vmem:[%s1 + $0x70] sm:$0xff]
  %v42 = vld [vmem:[%s1 + $0x78] sm:$0xff]
  %v43 = vld [vmem:[%s1 + $0x80] sm:$0xff]
  %v44 = vld [vmem:[%s1 + $0x88] sm:$0xff]
  %v45 = vld [vmem:[%s1 + $0x90] sm:$0xff]
  %v46 = vld [vmem:[%s1 + $0x98] sm:$0xff]
  %v47 = vld [vmem:[%s1 + $0xa0] sm:$0xff]
  %v48 = vld [vmem:[%s1 + $0xa8] sm:$0xff]
  %v49 = vld [vmem:[%s1 + $0xb0] sm:$0xff]
  %v50 = vld [vmem:[%s1 + $0xb8] sm:$0xff]
  %v51 = vld [vmem:[%s1 + $0xc0] sm:$0xff]
  %v52 = vld [vmem:[%s1 + $0xc8] sm:$0xff]
  %v53 = vld [vmem:[%s1 + $0xd0] sm:$0xff]
  %v54 = vld [vmem:[%s1 + $0xd8] sm:$0xff]
  %v55 = vld [vmem:[%s1 + $0xe0] sm:$0xff]
  %v56 = vld [vmem:[%s1 + $0xe8] sm:$0xff]
  %v57 = vld [vmem:[%s1 + $0xf0] sm:$0xff]
  %v58 = vld [vmem:[%s1 + $0xf8] sm:$0xff]
  %v59 = vld [vmem:[%s1 + $0x100] sm:$0xff]
  %v60 = vld [vmem:[%s1 + $0x108] sm:$0xff]
  %v61 = vld [vmem:[%s1 + $0x110] sm:$0xff]
  %v62 = vld [vmem:[%s1 + $0x118] sm:$0xff]
  %v63 = vld [vmem:[%s1 + $0x120] sm:$0xff]
  %v64 = vld [vmem:[%s1 + $0x128] sm:$0xff]
  %v65 = vld [vmem:[%s1 + $0x130] sm:$0xff]
  %v66 = vld [vmem:[%s1 + $0x138] sm:$0xff]
  %v67 = vld [vmem:[%s1 + $0x140] sm:$0xff]
  %v68 = vld [vmem:[%s1 + $0x148] sm:$0xff]
  %v69 = vld [vmem:[%s1 + $0x150] sm:$0xff]
  %v70 = vld [vmem:[%s1 + $0x158] sm:$0xff]
  %v71 = vld [vmem:[%s1 + $0x160] sm:$0xff]
  %v72 = vld [vmem:[%s1 + $0x168] sm:$0xff]
  %v73 = vld [vmem:[%s1 + $0x170] sm:$0xff]
  %v74 = vld [vmem:[%s1 + $0x178] sm:$0xff]
  %v75 = vld [vmem:[%s1 + $0x180] sm:$0xff]
  %v76 = vld [vmem:[%s1 + $0x188] sm:$0xff]
  %v77 = vld [vmem:[%s1 + $0x190] sm:$0xff]
  %v78 = vld [vmem:[%s1 + $0x198] sm:$0xff]
  %v79 = vld [vmem:[%s1 + $0x1a0] sm:$0xff]
  %v80 = vld [vmem:[%s1 + $0x1a8] sm:$0xff]
  %v81 = vld [vmem:[%s1 + $0x1b0] sm:$0xff]
  %v82 = vld [vmem:[%s1 + $0x1b8] sm:$0xff]
  %v83 = vld [vmem:[%s1 + $0x1c0] sm:$0xff]
  %v84 = vld [vmem:[%s1 + $0x1c8] sm:$0xff]
  %v85 = vld [vmem:[%s1 + $0x1d0] sm:$0xff]
  %v86 = vld [vmem:[%s1 + $0x1d8] sm:$0xff]
  %v87 = vld [vmem:[%s1 + $0x1e0] sm:$0xff]
  %v88 = vld [vmem:[%s1 + $0x1e8] sm:$0xff]
  %v89 = vld [vmem:[%s1 + $0x1f0] sm:$0xff]
  %v90 = vld [vmem:[%s1 + $0x1f8] sm:$0xff]
  %v91 = vld [vmem:[%s1 + $0x200] sm:$0xff]
  %v92 = vld [vmem:[%s1 + $0x208] sm:$0xff]
  %v93 = vld [vmem:[%s1 + $0x210] sm:$0xff]
  %v94 = vld [vmem:[%s1 + $0x218] sm:$0xff]
  %v95 = vld [vmem:[%s1 + $0x220] sm:$0xff]
  %v96 = vld [vmem:[%s1 + $0x228] sm:$0xff]
  %v97 = vld [vmem:[%s1 + $0x230] sm:$0xff]
  %v98 = vld [vmem:[%s1 + $0x238] sm:$0xff]
  %v99 = vld [vmem:[%s1 + $0x240] sm:$0xff]
  %v100 = vld [vmem:[%s1 + $0x248] sm:$0xff]
  %v101 = vld [vmem:[%s1 + $0x250] sm:$0xff]
  %v102 = vld [vmem:[%s1 + $0x258] sm:$0xff]
  %v103 = vld [vmem:[%s1 + $0x260] sm:$0xff]
  %v104 = vld [vmem:[%s1 + $0x268] sm:$0xff]
  %v105 = vld [vmem:[%s1 + $0x270] sm:$0xff]
  %v106 = vld [vmem:[%s1 + $0x278] sm:$0xff]
  %v107 = vld [vmem:[%s1 + $0x280] sm:$0xff]
  %v108 = vld [vmem:[%s1 + $0x288] sm:$0xff]
  %v109 = vld [vmem:[%s1 + $0x290] sm:$0xff]
  %v110 = vld [vmem:[%s1 + $0x298] sm:$0xff]
  %v111 = vld [vmem:[%s1 + $0x2a0] sm:$0xff]
  %v112 = vld [vmem:[%s1 + $0x2a8] sm:$0xff]
  %v113 = vld [vmem:[%s1 + $0x2b0] sm:$0xff]
  %v114 = vld [vmem:[%s1 + $0x2b8] sm:$0xff]
  %v115 = vld [vmem:[%s1 + $0x2c0] sm:$0xff]
  %v116 = vld [vmem:[%s1 + $0x2c8] sm:$0xff]
  %v117 = vld [vmem:[%s1 + $0x2d0] sm:$0xff]
  %v118 = vld [vmem:[%s1 + $0x2d8] sm:$0xff]
  %v119 = vld [vmem:[%s1 + $0x2e0] sm:$0xff]
  %v120 = vld [vmem:[%s1 + $0x2e8] sm:$0xff]
  %v121 = vld [vmem:[%s1 + $0x2f0] sm:$0xff]
  %v122 = vld [vmem:[%s1 + $0x2f8] sm:$0xff]
  %v123 = vld [vmem:[%s2] sm:$0x1]
  %v125 = vlaneseq
  %v126 = vshrl.u32 %v125, 7
  %v127 = vsub.s32 0, %v126
  %v128 = vrot.slane %v123, %v127
  %130 = vmatprep.subr.mxu0 0.0
  %131 = vmatpush1.msra.mxu0 %v27
  %132 = vmatprep.subr.mxu0 0.0
  %133 = vmatpush1.msra.mxu0 %v28
  %134 = vmatprep.subr.mxu0 0.0
  %135 = vmatpush1.msra.mxu0 %v29
  %136 = vmatprep.subr.mxu0 0.0
  %137 = vmatpush1.msra.mxu0 %v30
  %138 = vmatprep.subr.mxu0 0.0
  %139 = vmatpush1.msra.mxu0 %v31
  %140 = vmatprep.subr.mxu0 0.0
  %141 = vmatpush1.msra.mxu0 %v32
  %142 = vmatprep.subr.mxu0 0.0
  %143 = vmatpush1.msra.mxu0 %v33
  %144 = vmatprep.subr.mxu0 0.0
  %145 = vmatpush1.msra.mxu0 %v34
  %146 = vmatprep.subr.mxu0 0.0
  %147 = vmatpush1.msra.mxu0 %v35
  %148 = vmatprep.subr.mxu0 0.0
  %149 = vmatpush1.msra.mxu0 %v36
  %150 = vmatprep.subr.mxu0 0.0
  %151 = vmatpush1.msra.mxu0 %v37
  %152 = vmatprep.subr.mxu0 0.0
  %153 = vmatpush1.msra.mxu0 %v38
  %154 = vmatprep.subr.mxu0 0.0
  %155 = vmatpush1.msra.mxu0 %v39
  %156 = vmatprep.subr.mxu0 0.0
  %157 = vmatpush1.msra.mxu0 %v40
  %158 = vmatprep.subr.mxu0 0.0
  %159 = vmatpush1.msra.mxu0 %v41
  %160 = vmatprep.subr.mxu0 0.0
  %161 = vmatpush1.msra.mxu0 %v42
  %162 = vmatprep.subr.mxu0 0.0
  %163 = vmatpush1.msra.mxu0 %v43
  %164 = vmatprep.subr.mxu0 0.0
  %165 = vmatpush1.msra.mxu0 %v44
  %166 = vmatprep.subr.mxu0 0.0
  %167 = vmatpush1.msra.mxu0 %v45
  %168 = vmatprep.subr.mxu0 0.0
  %169 = vmatpush1.msra.mxu0 %v46
  %170 = vmatprep.subr.mxu0 0.0
  %171 = vmatpush1.msra.mxu0 %v47
  %172 = vmatprep.subr.mxu0 0.0
  %173 = vmatpush1.msra.mxu0 %v48
  %174 = vmatprep.subr.mxu0 0.0
  %175 = vmatpush1.msra.mxu0 %v49
  %176 = vmatprep.subr.mxu0 0.0
  %177 = vmatpush1.msra.mxu0 %v50
  %178 = vmatprep.subr.mxu0 0.0
  %179 = vmatpush1.msra.mxu0 %v51
  %180 = vmatprep.subr.mxu0 0.0
  %181 = vmatpush1.msra.mxu0 %v52
  %182 = vmatprep.subr.mxu0 0.0
  %183 = vmatpush1.msra.mxu0 %v53
  %184 = vmatprep.subr.mxu0 0.0
  %185 = vmatpush1.msra.mxu0 %v54
  %186 = vmatprep.subr.mxu0 0.0
  %187 = vmatpush1.msra.mxu0 %v55
  %188 = vmatprep.subr.mxu0 0.0
  %189 = vmatpush1.msra.mxu0 %v56
  %190 = vmatprep.subr.mxu0 0.0
  %191 = vmatpush1.msra.mxu0 %v57
  %192 = vmatprep.subr.mxu0 0.0
  %193 = vmatpush1.msra.mxu0 %v58
  %194 = vmatprep.mubr.f32.mxu0 %v22
  %195 = vmatmul.mubr.f32.gmra.mrb[0].mxu0 %v21
  %v196 = vpop.f32.mrb[0].mxu0
  %v197 = vadd.f32 %v128, %v196
  %v198 = vpop.f32.mrb[0].mxu0
  %199 = vdwg.mxu0
  %200 = vmatprep.subr.mxu0 0.0
  %201 = vmatpush1.msra.mxu0 %v59
  %202 = vmatprep.subr.mxu0 0.0
  %203 = vmatpush1.msra.mxu0 %v60
  %204 = vmatprep.subr.mxu0 0.0
  %205 = vmatpush1.msra.mxu0 %v61
  %206 = vmatprep.subr.mxu0 0.0
  %207 = vmatpush1.msra.mxu0 %v62
  %208 = vmatprep.subr.mxu0 0.0
  %209 = vmatpush1.msra.mxu0 %v63
  %210 = vmatprep.subr.mxu0 0.0
  %211 = vmatpush1.msra.mxu0 %v64
  %212 = vmatprep.subr.mxu0 0.0
  %213 = vmatpush1.msra.mxu0 %v65
  %214 = vmatprep.subr.mxu0 0.0
  %215 = vmatpush1.msra.mxu0 %v66
  %216 = vmatprep.subr.mxu0 0.0
  %217 = vmatpush1.msra.mxu0 %v67
  %218 = vmatprep.subr.mxu0 0.0
  %219 = vmatpush1.msra.mxu0 %v68
  %220 = vmatprep.subr.mxu0 0.0
  %221 = vmatpush1.msra.mxu0 %v69
  %222 = vmatprep.subr.mxu0 0.0
  %223 = vmatpush1.msra.mxu0 %v70
  %224 = vmatprep.subr.mxu0 0.0
  %225 = vmatpush1.msra.mxu0 %v71
  %226 = vmatprep.subr.mxu0 0.0
  %227 = vmatpush1.msra.mxu0 %v72
  %228 = vmatprep.subr.mxu0 0.0
  %229 = vmatpush1.msra.mxu0 %v73
  %230 = vmatprep.subr.mxu0 0.0
  %231 = vmatpush1.msra.mxu0 %v74
  %232 = vmatprep.subr.mxu0 0.0
  %233 = vmatpush1.msra.mxu0 %v75
  %234 = vmatprep.subr.mxu0 0.0
  %235 = vmatpush1.msra.mxu0 %v76
  %236 = vmatprep.subr.mxu0 0.0
  %237 = vmatpush1.msra.mxu0 %v77
  %238 = vmatprep.subr.mxu0 0.0
  %239 = vmatpush1.msra.mxu0 %v78
  %240 = vmatprep.subr.mxu0 0.0
  %241 = vmatpush1.msra.mxu0 %v79
  %242 = vmatprep.subr.mxu0 0.0
  %243 = vmatpush1.msra.mxu0 %v80
  %244 = vmatprep.subr.mxu0 0.0
  %245 = vmatpush1.msra.mxu0 %v81
  %246 = vmatprep.subr.mxu0 0.0
  %247 = vmatpush1.msra.mxu0 %v82
  %248 = vmatprep.subr.mxu0 0.0
  %249 = vmatpush1.msra.mxu0 %v83
  %250 = vmatprep.subr.mxu0 0.0
  %251 = vmatpush1.msra.mxu0 %v84
  %252 = vmatprep.subr.mxu0 0.0
  %253 = vmatpush1.msra.mxu0 %v85
  %254 = vmatprep.subr.mxu0 0.0
  %255 = vmatpush1.msra.mxu0 %v86
  %256 = vmatprep.subr.mxu0 0.0
  %257 = vmatpush1.msra.mxu0 %v87
  %258 = vmatprep.subr.mxu0 0.0
  %259 = vmatpush1.msra.mxu0 %v88
  %260 = vmatprep.subr.mxu0 0.0
  %261 = vmatpush1.msra.mxu0 %v89
  %262 = vmatprep.subr.mxu0 0.0
  %263 = vmatpush1.msra.mxu0 %v90
  %264 = vmatprep.mubr.f32.mxu0 %v24
  %265 = vmatmul.mubr.f32.gmra.mrb[0].mxu0 %v23
  %v266 = vpop.f32.mrb[0].mxu0
  %v267 = vadd.f32 %v197, %v266
  %v268 = vpop.f32.mrb[0].mxu0
  %269 = vdwg.mxu0
  %270 = vmatprep.subr.mxu0 0.0
  %271 = vmatpush1.msra.mxu0 %v91
  %272 = vmatprep.subr.mxu0 0.0
  %273 = vmatpush1.msra.mxu0 %v92
  %274 = vmatprep.subr.mxu0 0.0
  %275 = vmatpush1.msra.mxu0 %v93
  %276 = vmatprep.subr.mxu0 0.0
  %277 = vmatpush1.msra.mxu0 %v94
  %278 = vmatprep.subr.mxu0 0.0
  %279 = vmatpush1.msra.mxu0 %v95
  %280 = vmatprep.subr.mxu0 0.0
  %281 = vmatpush1.msra.mxu0 %v96
  %282 = vmatprep.subr.mxu0 0.0
  %283 = vmatpush1.msra.mxu0 %v97
  %284 = vmatprep.subr.mxu0 0.0
  %285 = vmatpush1.msra.mxu0 %v98
  %286 = vmatprep.subr.mxu0 0.0
  %287 = vmatpush1.msra.mxu0 %v99
  %288 = vmatprep.subr.mxu0 0.0
  %289 = vmatpush1.msra.mxu0 %v100
  %290 = vmatprep.subr.mxu0 0.0
  %291 = vmatpush1.msra.mxu0 %v101
  %292 = vmatprep.subr.mxu0 0.0
  %293 = vmatpush1.msra.mxu0 %v102
  %294 = vmatprep.subr.mxu0 0.0
  %295 = vmatpush1.msra.mxu0 %v103
  %296 = vmatprep.subr.mxu0 0.0
  %297 = vmatpush1.msra.mxu0 %v104
  %298 = vmatprep.subr.mxu0 0.0
  %299 = vmatpush1.msra.mxu0 %v105
  %300 = vmatprep.subr.mxu0 0.0
  %301 = vmatpush1.msra.mxu0 %v106
  %302 = vmatprep.subr.mxu0 0.0
  %303 = vmatpush1.msra.mxu0 %v107
  %304 = vmatprep.subr.mxu0 0.0
  %305 = vmatpush1.msra.mxu0 %v108
  %306 = vmatprep.subr.mxu0 0.0
  %307 = vmatpush1.msra.mxu0 %v109
  %308 = vmatprep.subr.mxu0 0.0
  %309 = vmatpush1.msra.mxu0 %v110
  %310 = vmatprep.subr.mxu0 0.0
  %311 = vmatpush1.msra.mxu0 %v111
  %312 = vmatprep.subr.mxu0 0.0
  %313 = vmatpush1.msra.mxu0 %v112
  %314 = vmatprep.subr.mxu0 0.0
  %315 = vmatpush1.msra.mxu0 %v113
  %316 = vmatprep.subr.mxu0 0.0
  %317 = vmatpush1.msra.mxu0 %v114
  %318 = vmatprep.subr.mxu0 0.0
  %319 = vmatpush1.msra.mxu0 %v115
  %320 = vmatprep.subr.mxu0 0.0
  %321 = vmatpush1.msra.mxu0 %v116
  %322 = vmatprep.subr.mxu0 0.0
  %323 = vmatpush1.msra.mxu0 %v117
  %324 = vmatprep.subr.mxu0 0.0
  %325 = vmatpush1.msra.mxu0 %v118
  %326 = vmatprep.subr.mxu0 0.0
  %327 = vmatpush1.msra.mxu0 %v119
  %328 = vmatprep.subr.mxu0 0.0
  %329 = vmatpush1.msra.mxu0 %v120
  %330 = vmatprep.subr.mxu0 0.0
  %331 = vmatpush1.msra.mxu0 %v121
  %332 = vmatprep.subr.mxu0 0.0
  %333 = vmatpush1.msra.mxu0 %v122
  %334 = vmatprep.mubr.f32.mxu0 %v26
  %335 = vmatmul.mubr.f32.gmra.mrb[0].mxu0 %v25
  %v336 = vpop.f32.mrb[0].mxu0
  %v337 = vadd.f32 %v267, %v336
  %v338 = vpop.f32.mrb[0].mxu0
  %339 = vdwg.mxu0
  %v340 = vmax.f32 %v337, 0.0
  %v341 = vld [vmem:[%s3] sm:$0x1]
  %v343 = vlaneseq
  %v344 = vshrl.u32 %v343, 7
  %v345 = vsub.s32 0, %v344
  %v346 = vrot.slane %v341, %v345
  %v348 = vmul.f32 %v340, %v346
  %vm349 = vcmask 523264
  %v350 = vsel %vm349, %v348, 0.0
  %351 = vadd.xlane.f32.xlu0 %v350
  %v352 = vpop.xlane.xlu0 %351
  %s353 = sld [smem:[#allocation2]]
  %v354 = vstv %s353
  %v355 = vadd.f32 %v352, %v354
  %v356 = vand.u32 2147483647, %v355
  %v357 = vsub.f32 0.0, %v356
  %v358 = vmul.f32 %v357, 1.442695
  %v359 = vpow.pop %v358
  %vm360 = vcmp.ge.f32.partialorder %v355, 0.0
  %v361 = vadd.f32 %v359, 1.0
  %v362 = vrcp.pop %v361
  %v363 = vmul.f32 1.0, %v362
  %v364 = vmul.f32 %v359, %v362
  %v365 = vsel %vm360, %v363, %v364
  %vm366 = vcmask 7168
  %367 = vst.msk [vmem:[%s5] sm:$0xff] %vm366, %v365
  // Predicated region
  $region22: #{tpu_custom_call.1} parent=0 // pred_check
    _
  $region23: #{tpu_custom_call.1} parent=0 // pred_check_branch
    %369 = sbr.rel (0) target = $region25
  $region24: #{tpu_custom_call.1} parent=0 // pred_region
    _
  $region25: #{tpu_custom_call.1} parent=0 // pred_fallthru
    _
  // Predicated region
  $region26: #{tpu_custom_call.1} parent=0 // pred_check
    _
  $region27: #{tpu_custom_call.1} parent=0 // pred_check_branch
    %371 = sbr.rel (0) target = $region29
  $region28: #{tpu_custom_call.1} parent=0 // pred_region
    _
  $region29: #{tpu_custom_call.1} parent=0 // pred_fallthru
    _

</llo_original>
